<compile_context>
chip_gen: v5e
topology: v5e:2x2
jax: 0.10.0
libtpu: 0.0.40
codegen_flags: <defaults>
</compile_context>

<pallas_src>
import jax
import jax.numpy as jnp
from jax.experimental import pallas as pl
from jax.experimental.pallas import tpu as pltpu


def mlp_kernel(x_ref, w1_ref, b1_ref, w2_ref, b2_ref, w3_ref, b3_ref, o_ref):
    # Feature-major tile: x_ref is (3, TB); output o_ref is a lane-dense (1, TB) row.
    xT = x_ref[...]                                   # (3, TB)   f32
    w1 = w1_ref[...]                                  # (64, 3)   f32

    # Layer 1: Linear(3, 64) + ReLU.  K=3 contraction as VPU broadcast-FMAs
    # (an MXU matmul would zero-pad K=3 to 128/256).  Emit h1 directly as bf16.
    h1 = (w1[:, 0:1] * xT[0:1, :]
          + w1[:, 1:2] * xT[1:2, :]
          + w1[:, 2:3] * xT[2:3, :]
          + b1_ref[...])                              # (64, TB) f32
    h1 = jnp.maximum(h1, 0.0).astype(jnp.bfloat16)    # fused bias+ReLU+cast pass

    # Layer 2: Linear(64, 64) + ReLU on the MXU (bf16 inputs, f32 accumulate).
    h2 = jnp.dot(w2_ref[...], h1,
                 preferred_element_type=jnp.float32)  # (64, TB) f32
    h2 = jnp.maximum(h2 + b2_ref[...], 0.0).astype(jnp.bfloat16)

    # Layer 3: Linear(64, 1) -> (1, TB) logits row.  bf16 operands, f32 accumulate.
    out = jnp.dot(w3_ref[...], h2, preferred_element_type=jnp.float32)
    o_ref[...] = (out + b3_ref[...]).astype(o_ref.dtype)


def _choose_tb(batch, tb_request):
    """Pick a batch tile: multiple of 128, capped for VMEM, and (when the batch is
    large enough) small enough to keep >= 2 grid steps for v7x dual-TC sharding."""
    tb = max(128, min(int(tb_request), 16384))        # 16K ~ practical v7x VMEM ceiling
    tb = (tb // 128) * 128
    if batch > 128:
        half = -(-batch // 2)                         # ceil(B/2)
        half = -(-half // 128) * 128                  # round up to 128
        tb = min(tb, half)                            # => grid_b >= 2
    return max(tb, 128)


def deep_binary_classifier_forward(x, params, *, tb=8192):
    """x: (B, 3) float32 -> (B, 1) float32 logits.  params in torch layout:
    W (out, in), b (out,)."""
    w1, b1, w2, b2, w3, b3 = params
    B, fin = x.shape
    assert fin == 3, "DeepBinaryClassifier expects 3 input features"

    tb = _choose_tb(B, tb)
    grid_b = pl.cdiv(B, tb)

    # Single feature-major copy of x (no pad pass); Pallas masks the ragged last block.
    x_t = x.astype(jnp.float32).T                     # (3, B)

    # Weight / bias prep (tiny, static, done once).
    w1_f = w1.astype(jnp.float32)                     # (64, 3)
    w2_mxu = w2.astype(jnp.bfloat16)                  # (64, 64) bf16 for the MXU
    w3_mxu = w3.astype(jnp.bfloat16)                  # (1, 64)  bf16 for the MXU
    b1_c = b1.reshape(64, 1).astype(jnp.float32)
    b2_c = b2.reshape(64, 1).astype(jnp.float32)
    b3_c = b3.reshape(1, 1).astype(jnp.float32)

    def const(shape):
        # Resident operand: same block every grid step -> stays in VMEM, no re-DMA.
        return pl.BlockSpec(shape, lambda i: tuple(0 for _ in shape))

    # VMEM budget: double-buffered x/out tiles + (64, tb) bf16/f32/bf16 temps + slack.
    est = 2 * (3 + 1) * tb * 4 + 64 * tb * (2 + 4 + 2) + (1 << 20)
    vmem_limit = int(min(max(2 * est, 32 << 20), 48 << 20))

    flops = B * (2 * 3 * 64 + 2 * 64 * 64 + 2 * 64)
    bytes_accessed = B * (3 * 4 + 1 * 4) + (64 * 3 + 64 + 64 * 64 + 64 + 64 + 1) * 4

    out_t = pl.pallas_call(
        mlp_kernel,
        out_shape=jax.ShapeDtypeStruct((1, B), jnp.float32),
        grid=(grid_b,),
        in_specs=[
            pl.BlockSpec((3, tb), lambda i: (0, i)),  # x tile, auto double-buffered
            const((64, 3)),                           # w1
            const((64, 1)),                           # b1
            const((64, 64)),                          # w2 (bf16)
            const((64, 1)),                           # b2
            const((1, 64)),                           # w3 (bf16)
            const((1, 1)),                            # b3
        ],
        out_specs=pl.BlockSpec((1, tb), lambda i: (0, i)),
        compiler_params=pltpu.CompilerParams(
            dimension_semantics=("parallel",),        # dual-TC sharding on v7x
            vmem_limit_bytes=vmem_limit,
        ),
        cost_estimate=pl.CostEstimate(
            flops=flops, transcendentals=0, bytes_accessed=bytes_accessed),
    )(x_t, w1_f, b1_c, w2_mxu, b2_c, w3_mxu, b3_c)

    # Back to torch-style (B, 1).
    return out_t.reshape(B, 1)


def init_linear_params(key, fan_in, fan_out):
    """Deterministic init mimicking torch.nn.Linear defaults, torch layout."""
    kw, kb = jax.random.split(key)
    bound = 1.0 / jnp.sqrt(fan_in)
    w = jax.random.uniform(kw, (fan_out, fan_in), jnp.float32, -bound, bound)
    b = jax.random.uniform(kb, (fan_out,), jnp.float32, -bound, bound)
    return w, b


def reference_forward(x, params):
    w1, b1, w2, b2, w3, b3 = params
    h1 = jnp.maximum(x @ w1.T + b1, 0.0)
    h2 = jnp.maximum(h1 @ w2.T + b2, 0.0)
    return h2 @ w3.T + b3


if __name__ == "__main__":
    key = jax.random.PRNGKey(0)
    k_x, k1, k2, k3 = jax.random.split(key, 4)

    B = 500                       # not a tile multiple -> exercises ragged last block
    x = jax.random.normal(k_x, (B, 3), jnp.float32)

    w1, b1 = init_linear_params(k1, 3, 64)
    w2, b2 = init_linear_params(k2, 64, 64)
    w3, b3 = init_linear_params(k3, 64, 1)
    params = (w1, b1, w2, b2, w3, b3)

    out = deep_binary_classifier_forward(x, params)   # tile chooser -> tb=256, 2 steps
    out = jax.block_until_ready(out)

    ref = reference_forward(x, params)
    assert out.shape == (B, 1)
    # Layers 2/3 run in bf16 on the MXU (f32 accumulate) -> loose tolerance (intentional).
    assert jnp.allclose(out, ref, atol=3e-2, rtol=3e-2), float(jnp.max(jnp.abs(out - ref)))

    print("KERNEL_OK")
</pallas_src>

<mosaic_0001>
module attributes {stable_mosaic.version = 11 : i64} {
  func.func @mlp_kernel(%arg0: i32, %arg1: memref<3x256xf32, #tpu.memory_space<vmem>>, %arg2: memref<64x3xf32, #tpu.memory_space<vmem>>, %arg3: memref<64x1xf32, #tpu.memory_space<vmem>>, %arg4: memref<64x64xbf16, #tpu.memory_space<vmem>>, %arg5: memref<64x1xf32, #tpu.memory_space<vmem>>, %arg6: memref<1x64xbf16, #tpu.memory_space<vmem>>, %arg7: memref<1x1xf32, #tpu.memory_space<vmem>>, %arg8: memref<1x256xf32, #tpu.memory_space<vmem>>) attributes {dimension_semantics = [#tpu.dimension_semantics<parallel>], iteration_bounds = array<i64: 2>, scalar_prefetch = 0 : i64, scratch_operands = 0 : i64, tpu.core_type = #tpu.core_type<tc>, window_params = [{transform_indices = @transform_0, window_bounds = array<i64: 3, 256>}, {pipeline_mode = #tpu.pipeline_mode<synchronous>, transform_indices = @transform_1, window_bounds = array<i64: 64, 3>}, {pipeline_mode = #tpu.pipeline_mode<synchronous>, transform_indices = @transform_2, window_bounds = array<i64: 64, 1>}, {pipeline_mode = #tpu.pipeline_mode<synchronous>, transform_indices = @transform_3, window_bounds = array<i64: 64, 64>}, {pipeline_mode = #tpu.pipeline_mode<synchronous>, transform_indices = @transform_4, window_bounds = array<i64: 64, 1>}, {pipeline_mode = #tpu.pipeline_mode<synchronous>, transform_indices = @transform_5, window_bounds = array<i64: 1, 64>}, {pipeline_mode = #tpu.pipeline_mode<synchronous>, transform_indices = @transform_6, window_bounds = array<i64: 1, 1>}, {transform_indices = @transform_7, window_bounds = array<i64: 1, 256>}]} {
    %c0 = arith.constant 0 : index
    %c0_0 = arith.constant 0 : index
    %0 = vector.load %arg1[%c0, %c0_0] : memref<3x256xf32, #tpu.memory_space<vmem>>, vector<3x256xf32>
    %c0_1 = arith.constant 0 : index
    %c0_2 = arith.constant 0 : index
    %1 = vector.load %arg2[%c0_1, %c0_2] : memref<64x3xf32, #tpu.memory_space<vmem>>, vector<64x3xf32>
    %2 = vector.extract_strided_slice %1 {offsets = [0, 0], sizes = [64, 1], strides = [1, 1]} : vector<64x3xf32> to vector<64x1xf32>
    %3 = vector.extract_strided_slice %0 {offsets = [0, 0], sizes = [1, 256], strides = [1, 1]} : vector<3x256xf32> to vector<1x256xf32>
    %4 = vector.broadcast %2 : vector<64x1xf32> to vector<64x256xf32>
    %5 = vector.broadcast %3 : vector<1x256xf32> to vector<64x256xf32>
    %6 = arith.mulf %4, %5 : vector<64x256xf32>
    %7 = vector.extract_strided_slice %1 {offsets = [0, 1], sizes = [64, 1], strides = [1, 1]} : vector<64x3xf32> to vector<64x1xf32>
    %8 = vector.extract_strided_slice %0 {offsets = [1, 0], sizes = [1, 256], strides = [1, 1]} : vector<3x256xf32> to vector<1x256xf32>
    %9 = vector.broadcast %7 : vector<64x1xf32> to vector<64x256xf32>
    %10 = vector.broadcast %8 : vector<1x256xf32> to vector<64x256xf32>
    %11 = arith.mulf %9, %10 : vector<64x256xf32>
    %12 = arith.addf %6, %11 : vector<64x256xf32>
    %13 = vector.extract_strided_slice %1 {offsets = [0, 2], sizes = [64, 1], strides = [1, 1]} : vector<64x3xf32> to vector<64x1xf32>
    %14 = vector.extract_strided_slice %0 {offsets = [2, 0], sizes = [1, 256], strides = [1, 1]} : vector<3x256xf32> to vector<1x256xf32>
    %15 = vector.broadcast %13 : vector<64x1xf32> to vector<64x256xf32>
    %16 = vector.broadcast %14 : vector<1x256xf32> to vector<64x256xf32>
    %17 = arith.mulf %15, %16 : vector<64x256xf32>
    %18 = arith.addf %12, %17 : vector<64x256xf32>
    %c0_3 = arith.constant 0 : index
    %c0_4 = arith.constant 0 : index
    %19 = vector.load %arg3[%c0_3, %c0_4] : memref<64x1xf32, #tpu.memory_space<vmem>>, vector<64x1xf32>
    %20 = vector.broadcast %19 : vector<64x1xf32> to vector<64x256xf32>
    %21 = arith.addf %18, %20 : vector<64x256xf32>
    %cst = arith.constant 0.000000e+00 : f32
    %22 = vector.broadcast %cst : f32 to vector<64x256xf32>
    %23 = arith.maximumf %21, %22 : vector<64x256xf32>
    %24 = arith.truncf %23 : vector<64x256xf32> to vector<64x256xbf16>
    %c0_5 = arith.constant 0 : index
    %c0_6 = arith.constant 0 : index
    %25 = vector.load %arg4[%c0_5, %c0_6] : memref<64x64xbf16, #tpu.memory_space<vmem>>, vector<64x64xbf16>
    %cst_7 = arith.constant dense<0.000000e+00> : vector<64x256xf32>
    %26 = tpu.matmul %25, %24, %cst_7 {dimension_numbers = #tpu.dot_dimension_numbers<[1], [0], [0], [1], [0, 0, 1, 1], [], []>} : vector<64x64xbf16>, vector<64x256xbf16>, vector<64x256xf32> -> vector<64x256xf32>
    %c0_8 = arith.constant 0 : index
    %c0_9 = arith.constant 0 : index
    %27 = vector.load %arg5[%c0_8, %c0_9] : memref<64x1xf32, #tpu.memory_space<vmem>>, vector<64x1xf32>
    %28 = vector.broadcast %27 : vector<64x1xf32> to vector<64x256xf32>
    %29 = arith.addf %26, %28 : vector<64x256xf32>
    %cst_10 = arith.constant 0.000000e+00 : f32
    %30 = vector.broadcast %cst_10 : f32 to vector<64x256xf32>
    %31 = arith.maximumf %29, %30 : vector<64x256xf32>
    %32 = arith.truncf %31 : vector<64x256xf32> to vector<64x256xbf16>
    %c0_11 = arith.constant 0 : index
    %c0_12 = arith.constant 0 : index
    %33 = vector.load %arg6[%c0_11, %c0_12] : memref<1x64xbf16, #tpu.memory_space<vmem>>, vector<1x64xbf16>
    %cst_13 = arith.constant dense<0.000000e+00> : vector<1x256xf32>
    %34 = tpu.matmul %33, %32, %cst_13 {dimension_numbers = #tpu.dot_dimension_numbers<[1], [0], [0], [1], [0, 0, 1, 1], [], []>} : vector<1x64xbf16>, vector<64x256xbf16>, vector<1x256xf32> -> vector<1x256xf32>
    %c0_14 = arith.constant 0 : index
    %c0_15 = arith.constant 0 : index
    %35 = vector.load %arg7[%c0_14, %c0_15] : memref<1x1xf32, #tpu.memory_space<vmem>>, vector<1x1xf32>
    %36 = vector.broadcast %35 : vector<1x1xf32> to vector<1x256xf32>
    %37 = arith.addf %34, %36 : vector<1x256xf32>
    %c0_16 = arith.constant 0 : index
    %c0_17 = arith.constant 0 : index
    %38 = vector.load %arg8[%c0_16, %c0_17] : memref<1x256xf32, #tpu.memory_space<vmem>>, vector<1x256xf32>
    tpu.vector_store %arg8[%c0_16, %c0_17], %37 {strides = array<i32>} : memref<1x256xf32, #tpu.memory_space<vmem>>, vector<1x256xf32>,
    return
  }
  func.func @transform_0(%arg0: i32) -> (i32, i32) {
    %c0_i32 = arith.constant 0 : i32
    %c0_i32_0 = arith.constant 0 : i32
    return %c0_i32, %arg0 : i32, i32
  }
  func.func @transform_1(%arg0: i32) -> (i32, i32) {
    %c0_i32 = arith.constant 0 : i32
    %c0_i32_0 = arith.constant 0 : i32
    %c0_i32_1 = arith.constant 0 : i32
    return %c0_i32, %c0_i32_0 : i32, i32
  }
  func.func @transform_2(%arg0: i32) -> (i32, i32) {
    %c0_i32 = arith.constant 0 : i32
    %c0_i32_0 = arith.constant 0 : i32
    %c0_i32_1 = arith.constant 0 : i32
    return %c0_i32, %c0_i32_0 : i32, i32
  }
  func.func @transform_3(%arg0: i32) -> (i32, i32) {
    %c0_i32 = arith.constant 0 : i32
    %c0_i32_0 = arith.constant 0 : i32
    %c0_i32_1 = arith.constant 0 : i32
    return %c0_i32, %c0_i32_0 : i32, i32
  }
  func.func @transform_4(%arg0: i32) -> (i32, i32) {
    %c0_i32 = arith.constant 0 : i32
    %c0_i32_0 = arith.constant 0 : i32
    %c0_i32_1 = arith.constant 0 : i32
    return %c0_i32, %c0_i32_0 : i32, i32
  }
  func.func @transform_5(%arg0: i32) -> (i32, i32) {
    %c0_i32 = arith.constant 0 : i32
    %c0_i32_0 = arith.constant 0 : i32
    %c0_i32_1 = arith.constant 0 : i32
    return %c0_i32, %c0_i32_0 : i32, i32
  }
  func.func @transform_6(%arg0: i32) -> (i32, i32) {
    %c0_i32 = arith.constant 0 : i32
    %c0_i32_0 = arith.constant 0 : i32
    %c0_i32_1 = arith.constant 0 : i32
    return %c0_i32, %c0_i32_0 : i32, i32
  }
  func.func @transform_7(%arg0: i32) -> (i32, i32) {
    %c0_i32 = arith.constant 0 : i32
    %c0_i32_0 = arith.constant 0 : i32
    return %c0_i32, %arg0 : i32, i32
  }
}

</mosaic_0001>

<llo_original>
// kernel: tpu_custom_call.1
$region0: #{tpu_custom_call.1}
  #allocation0 [shape = 'u32[]', space=smem, size = 0x4, offset = 0x4, fixed_abs, tag = 'smem constant byte address 0x4 - core index']
  #allocation1 [shape = 'u32[72,128]{1,0:T(1,128)}', space=vmem, size = 0x9000, scoped, tag = 'internal scratch']
  #allocation2 [shape = 'f32[1,1]{1,0:T(1,128)S(1)}', space=vmem, size = 0x200, scoped, tag = 'scoped memory for tpu_custom_call.1']
  %s0 = inlined_call_operand.vmem [shape: f32[3,500], index: 0, kind: input, shape index: {}]
  %s1 = inlined_call_operand.vmem [shape: f32[64,3], index: 1, kind: input, shape index: {}]
  %s2 = inlined_call_operand.vmem [shape: f32[64,1], index: 2, kind: input, shape index: {}]
  %s3 = inlined_call_operand.vmem [shape: bf16[64,64], index: 3, kind: input, shape index: {}]
  %s4 = inlined_call_operand.vmem [shape: f32[64,1], index: 4, kind: input, shape index: {}]
  %s5 = inlined_call_operand.vmem [shape: bf16[1,64], index: 5, kind: input, shape index: {}]
  %s6 = inlined_call_operand.<no memory space> [shape: f32[1,1], index: 6, kind: input, shape index: {}]
  %s7 = inlined_call_operand.hbm [shape: f32[1,500], index: 7, kind: output, shape index: {}]
  %s8 = sld [smem:[#allocation0]]
  $region61: #{tpu_custom_call.1} parent=0
    _
  %s10 = ssub.s32 1, %s8
  %s11 = scalar_select 0, %s10, %s8
  %v12 = vstv %s6
  %13 = vst [vmem:[#allocation2] sm:$0x1] %v12
  $region1: #{tpu_custom_call.1} parent=0
    #allocation3 [shape = 'u8[2048]{0}', space=vmem, size = 0x800, scoped, tag = 'output window, operand 0']
    #allocation4 [shape = 's32[2]{0}', space=sflag, size = 0x8, scoped, tag = 'scoped memory for tpu_custom_call.1']
    %14 = vsyncpa [#allocation4], 0
    %s15 = scalar_lea.sflag [#allocation4], 1
    %16 = vsyncpa %s15, 0
    loop: start=0, step=1, limit=4
    $region2: #{tpu_custom_call.1} parent=1 // loop_pre_header
      _
    $region3: #{tpu_custom_call.1} parent=1 // loop_header
      %s18 = sphi 0, %s22
      %p19 = scmp.ge.s32.totalorder %s18, 4
      %s28 = sphi 0, %s30
      %s31 = sphi 0, %s28
      %s32 = sphi 0, %s31
      %s48 = sphi 0, %s32
      %s52 = sphi 0, %s52
      %s54 = sphi 0, %s52
      %s55 = sphi 0, %s54
      %s69 = sphi 0, %s55
      %s73 = sphi 0, %s73
      %s75 = sphi 0, %s73
      %s76 = sphi 0, %s75
      %s90 = sphi 0, %s76
      %s94 = sphi 0, %s94
      %s96 = sphi 0, %s94
      %s97 = sphi 0, %s96
      %s111 = sphi 0, %s97
      %s115 = sphi 0, %s115
      %s117 = sphi 0, %s115
      %s118 = sphi 0, %s117
      %s132 = sphi 0, %s118
      %s136 = sphi 0, %s136
      %s138 = sphi 0, %s136
      %s139 = sphi 0, %s138
      %s153 = sphi 0, %s139
      %s157 = sphi 0, %s157
      %s159 = sphi 0, %s157
      %s160 = sphi 0, %s159
      %s174 = sphi 0, %s160
      %s180 = sphi 0, %s182
      %s183 = sphi 0, %s180
      %s184 = sphi 0, %s183
      %s200 = sphi 0, %s184
    $region4: #{tpu_custom_call.1} parent=1 // loop_header_branch
      %21 = sbr.rel (%p19) target = $region8
    $region5: #{tpu_custom_call.1} parent=1 // loop_body
      %s23 = ssub.s32 %s18, 1
      %s24 = ssub.s32 %s18, 2
      %s25 = sadd.s32 %s18, 1
      %s26 = ssub.s32 %s18, %s25
      %p27 = scmp.eq.s32.totalorder %s26, 0
      %s29 = sadd.s32 %s28, 1
      %s30 = scalar_select %p27, %s28, %s29
      %p33 = pneg %p27
      %p34 = scmp.eq.s32.totalorder %s18, 1
      %p35 = por %p33, %p34
      %p36 = scmp.ne.s32.totalorder %s28, %s31
      %p37 = scmp.eq.s32.totalorder %s18, 0
      %p38 = por %p36, %p37
      %p39 = scmp.ne.s32.totalorder %s28, %s31
      %p40 = scmp.eq.s32.totalorder %s23, 1
      %p41 = por %p39, %p40
      %p42 = scmp.ne.s32.totalorder %s31, %s32
      %p43 = scmp.eq.s32.totalorder %s23, 0
      %p44 = por %p42, %p43
      %p45 = scmp.ne.s32.totalorder %s31, %s32
      %p46 = scmp.eq.s32.totalorder %s24, 1
      %p47 = por %p45, %p46
      %p49 = scmp.ne.s32.totalorder %s32, %s48
      %p50 = scmp.eq.s32.totalorder %s24, 0
      %p51 = por %p49, %p50
      %s53 = sadd.s32 %s52, 1
      %p56 = scmp.eq.s32.totalorder %s18, 1
      %p57 = scmp.ne.s32.totalorder %s52, %s54
      %p58 = scmp.eq.s32.totalorder %s18, 0
      %p59 = por %p57, %p58
      %p60 = scmp.ne.s32.totalorder %s52, %s54
      %p61 = scmp.eq.s32.totalorder %s23, 1
      %p62 = por %p60, %p61
      %p63 = scmp.ne.s32.totalorder %s54, %s55
      %p64 = scmp.eq.s32.totalorder %s23, 0
      %p65 = por %p63, %p64
      %p66 = scmp.ne.s32.totalorder %s54, %s55
      %p67 = scmp.eq.s32.totalorder %s24, 1
      %p68 = por %p66, %p67
      %p70 = scmp.ne.s32.totalorder %s55, %s69
      %p71 = scmp.eq.s32.totalorder %s24, 0
      %p72 = por %p70, %p71
      %s74 = sadd.s32 %s73, 1
      %p77 = scmp.eq.s32.totalorder %s18, 1
      %p78 = scmp.ne.s32.totalorder %s73, %s75
      %p79 = scmp.eq.s32.totalorder %s18, 0
      %p80 = por %p78, %p79
      %p81 = scmp.ne.s32.totalorder %s73, %s75
      %p82 = scmp.eq.s32.totalorder %s23, 1
      %p83 = por %p81, %p82
      %p84 = scmp.ne.s32.totalorder %s75, %s76
      %p85 = scmp.eq.s32.totalorder %s23, 0
      %p86 = por %p84, %p85
      %p87 = scmp.ne.s32.totalorder %s75, %s76
      %p88 = scmp.eq.s32.totalorder %s24, 1
      %p89 = por %p87, %p88
      %p91 = scmp.ne.s32.totalorder %s76, %s90
      %p92 = scmp.eq.s32.totalorder %s24, 0
      %p93 = por %p91, %p92
      %s95 = sadd.s32 %s94, 1
      %p98 = scmp.eq.s32.totalorder %s18, 1
      %p99 = scmp.ne.s32.totalorder %s94, %s96
      %p100 = scmp.eq.s32.totalorder %s18, 0
      %p101 = por %p99, %p100
      %p102 = scmp.ne.s32.totalorder %s94, %s96
      %p103 = scmp.eq.s32.totalorder %s23, 1
      %p104 = por %p102, %p103
      %p105 = scmp.ne.s32.totalorder %s96, %s97
      %p106 = scmp.eq.s32.totalorder %s23, 0
      %p107 = por %p105, %p106
      %p108 = scmp.ne.s32.totalorder %s96, %s97
      %p109 = scmp.eq.s32.totalorder %s24, 1
      %p110 = por %p108, %p109
      %p112 = scmp.ne.s32.totalorder %s97, %s111
      %p113 = scmp.eq.s32.totalorder %s24, 0
      %p114 = por %p112, %p113
      %s116 = sadd.s32 %s115, 1
      %p119 = scmp.eq.s32.totalorder %s18, 1
      %p120 = scmp.ne.s32.totalorder %s115, %s117
      %p121 = scmp.eq.s32.totalorder %s18, 0
      %p122 = por %p120, %p121
      %p123 = scmp.ne.s32.totalorder %s115, %s117
      %p124 = scmp.eq.s32.totalorder %s23, 1
      %p125 = por %p123, %p124
      %p126 = scmp.ne.s32.totalorder %s117, %s118
      %p127 = scmp.eq.s32.totalorder %s23, 0
      %p128 = por %p126, %p127
      %p129 = scmp.ne.s32.totalorder %s117, %s118
      %p130 = scmp.eq.s32.totalorder %s24, 1
      %p131 = por %p129, %p130
      %p133 = scmp.ne.s32.totalorder %s118, %s132
      %p134 = scmp.eq.s32.totalorder %s24, 0
      %p135 = por %p133, %p134
      %s137 = sadd.s32 %s136, 1
      %p140 = scmp.eq.s32.totalorder %s18, 1
      %p141 = scmp.ne.s32.totalorder %s136, %s138
      %p142 = scmp.eq.s32.totalorder %s18, 0
      %p143 = por %p141, %p142
      %p144 = scmp.ne.s32.totalorder %s136, %s138
      %p145 = scmp.eq.s32.totalorder %s23, 1
      %p146 = por %p144, %p145
      %p147 = scmp.ne.s32.totalorder %s138, %s139
      %p148 = scmp.eq.s32.totalorder %s23, 0
      %p149 = por %p147, %p148
      %p150 = scmp.ne.s32.totalorder %s138, %s139
      %p151 = scmp.eq.s32.totalorder %s24, 1
      %p152 = por %p150, %p151
      %p154 = scmp.ne.s32.totalorder %s139, %s153
      %p155 = scmp.eq.s32.totalorder %s24, 0
      %p156 = por %p154, %p155
      %s158 = sadd.s32 %s157, 1
      %p161 = scmp.eq.s32.totalorder %s18, 1
      %p162 = scmp.ne.s32.totalorder %s157, %s159
      %p163 = scmp.eq.s32.totalorder %s18, 0
      %p164 = por %p162, %p163
      %p165 = scmp.ne.s32.totalorder %s157, %s159
      %p166 = scmp.eq.s32.totalorder %s23, 1
      %p167 = por %p165, %p166
      %p168 = scmp.ne.s32.totalorder %s159, %s160
      %p169 = scmp.eq.s32.totalorder %s23, 0
      %p170 = por %p168, %p169
      %p171 = scmp.ne.s32.totalorder %s159, %s160
      %p172 = scmp.eq.s32.totalorder %s24, 1
      %p173 = por %p171, %p172
      %p175 = scmp.ne.s32.totalorder %s160, %s174
      %p176 = scmp.eq.s32.totalorder %s24, 0
      %p177 = por %p175, %p176
      %s178 = ssub.s32 %s18, %s25
      %p179 = scmp.eq.s32.totalorder %s178, 0
      %s181 = sadd.s32 %s180, 1
      %s182 = scalar_select %p179, %s180, %s181
      %p185 = pneg %p179
      %p186 = scmp.eq.s32.totalorder %s18, 1
      %p187 = por %p185, %p186
      %p188 = scmp.ne.s32.totalorder %s180, %s183
      %p189 = scmp.eq.s32.totalorder %s18, 0
      %p190 = por %p188, %p189
      %p191 = scmp.ne.s32.totalorder %s180, %s183
      %p192 = scmp.eq.s32.totalorder %s23, 1
      %p193 = por %p191, %p192
      %p194 = scmp.ne.s32.totalorder %s183, %s184
      %p195 = scmp.eq.s32.totalorder %s23, 0
      %p196 = por %p194, %p195
      %p197 = scmp.ne.s32.totalorder %s183, %s184
      %p198 = scmp.eq.s32.totalorder %s24, 1
      %p199 = por %p197, %p198
      %p201 = scmp.ne.s32.totalorder %s184, %s200
      %p202 = scmp.eq.s32.totalorder %s24, 0
      %p203 = por %p201, %p202
      %p204 = scmp.le.s32.totalorder 1, %s18
      %p205 = scmp.lt.s32.totalorder %s18, 3
      %p206 = pnand %p204, %p205
      %p207 = pneg %p206
      // Predicated region
      $region9: #{tpu_custom_call.1} parent=5 // pred_check
        _
      $region10: #{tpu_custom_call.1} parent=5 // pred_check_branch
        %209 = sbr.rel (%p206) target = $region12
      $region11: #{tpu_custom_call.1} parent=5 // pred_region
        %s210 = ssub.s32 %s18, 1
        // Predicated region
        $region13: #{tpu_custom_call.1} parent=11 // pred_check
          %p211 = pneg %p65
        $region14: #{tpu_custom_call.1} parent=11 // pred_check_branch
          %213 = sbr.rel (%p211) target = $region16
        $region15: #{tpu_custom_call.1} parent=11 // pred_region
          _
        $region16: #{tpu_custom_call.1} parent=11 // pred_fallthru
          _
        // Predicated region
        $region17: #{tpu_custom_call.1} parent=11 // pred_check
          %p214 = pneg %p86
        $region18: #{tpu_custom_call.1} parent=11 // pred_check_branch
          %216 = sbr.rel (%p214) target = $region20
        $region19: #{tpu_custom_call.1} parent=11 // pred_region
          _
        $region20: #{tpu_custom_call.1} parent=11 // pred_fallthru
          _
        // Predicated region
        $region21: #{tpu_custom_call.1} parent=11 // pred_check
          %p217 = pneg %p107
        $region22: #{tpu_custom_call.1} parent=11 // pred_check_branch
          %219 = sbr.rel (%p217) target = $region24
        $region23: #{tpu_custom_call.1} parent=11 // pred_region
          _
        $region24: #{tpu_custom_call.1} parent=11 // pred_fallthru
          _
        // Predicated region
        $region25: #{tpu_custom_call.1} parent=11 // pred_check
          %p220 = pneg %p128
        $region26: #{tpu_custom_call.1} parent=11 // pred_check_branch
          %222 = sbr.rel (%p220) target = $region28
        $region27: #{tpu_custom_call.1} parent=11 // pred_region
          _
        $region28: #{tpu_custom_call.1} parent=11 // pred_fallthru
          _
        // Predicated region
        $region29: #{tpu_custom_call.1} parent=11 // pred_check
          %p223 = pneg %p149
        $region30: #{tpu_custom_call.1} parent=11 // pred_check_branch
          %225 = sbr.rel (%p223) target = $region32
        $region31: #{tpu_custom_call.1} parent=11 // pred_region
          _
        $region32: #{tpu_custom_call.1} parent=11 // pred_fallthru
          _
        // Predicated region
        $region33: #{tpu_custom_call.1} parent=11 // pred_check
          %p226 = pneg %p170
        $region34: #{tpu_custom_call.1} parent=11 // pred_check_branch
          %228 = sbr.rel (%p226) target = $region36
        $region35: #{tpu_custom_call.1} parent=11 // pred_region
          _
        $region36: #{tpu_custom_call.1} parent=11 // pred_fallthru
          _
      $region12: #{tpu_custom_call.1} parent=5 // pred_fallthru
        _
      %p229 = scmp.lt.s32.totalorder %s18, 2
      // Predicated region
      $region37: #{tpu_custom_call.1} parent=5 // pred_check
        %p230 = pneg %p229
      $region38: #{tpu_custom_call.1} parent=5 // pred_check_branch
        %232 = sbr.rel (%p230) target = $region40
      $region39: #{tpu_custom_call.1} parent=5 // pred_region
        // Predicated region
        $region41: #{tpu_custom_call.1} parent=39 // pred_check
          %p233 = pneg %p38
        $region42: #{tpu_custom_call.1} parent=39 // pred_check_branch
          %235 = sbr.rel (%p233) target = $region44
        $region43: #{tpu_custom_call.1} parent=39 // pred_region
          %s236 = smul.u32 2, %s18
          %p237 = scmp.lt.s32.totalorder %s236, 3
          %s238 = scalar_select %p237, %s236, 3
          %s239 = smul.addr %s238, 4
          %s240 = scalar_lea.vmem %s0, %s239
          %s241 = smul.u32 2, %s18
        $region44: #{tpu_custom_call.1} parent=39 // pred_fallthru
          _
      $region40: #{tpu_custom_call.1} parent=5 // pred_fallthru
        _
      %p242 = scmp.le.s32.totalorder 1, %s18
      %p243 = scmp.lt.s32.totalorder %s18, 3
      %p244 = pnand %p242, %p243
      %p245 = pneg %p244
      // Predicated region
      $region45: #{tpu_custom_call.1} parent=5 // pred_check
        _
      $region46: #{tpu_custom_call.1} parent=5 // pred_check_branch
        %247 = sbr.rel (%p244) target = $region48
      $region47: #{tpu_custom_call.1} parent=5 // pred_region
        %s248 = ssub.s32 %s18, 1
        %s249 = smul.u32 2, %s23
        %p250 = scmp.lt.s32.totalorder %s249, 3
        %s251 = scalar_select %p250, %s249, 3
        %s252 = smul.addr %s251, 4
        %s253 = scalar_lea.vmem %s0, %s252
        %p254 = pneg %p44
        %p255 = pneg %p41
        %p256 = pneg %p65
        %p257 = pneg %p62
        %p258 = pneg %p86
        %p259 = pneg %p83
        %p260 = pneg %p107
        %p261 = pneg %p104
        %p262 = pneg %p128
        %p263 = pneg %p125
        %p264 = pneg %p149
        %p265 = pneg %p146
        %p266 = pneg %p170
        %p267 = pneg %p167
        %p268 = pneg %p196
        %p269 = pneg %p193
        %s270 = sand.u32 %s183, 1
        %s271 = scalar_lea.sflag [#allocation4], %s270
        %s272 = sand.u32 %s183, 1
        %s273 = smul.addr %s272, 2
        %s274 = scalar_lea.vmem [#allocation3], %s273
        %s275 = smul.u32 2, %s23
        %p276 = scmp.lt.s32.totalorder %s275, 3
        %s277 = scalar_select %p276, %s275, 3
        %s278 = smul.addr %s277, 4
        %s279 = scalar_lea.vmem %s0, %s278
        %s280 = smul.u32 2, %s23
        %s281 = smul.u32 2, %s23
        %v283 = vld [vmem:[%s279] sm:$0x77]
        %v284 = vld [vmem:[%s1] sm:$0xff]
        %v285 = vld [vmem:[%s1 + $0x8] sm:$0xff]
        %v286 = vld [vmem:[%s1 + $0x10] sm:$0xff]
        %v287 = vld [vmem:[%s1 + $0x18] sm:$0xff]
        %v288 = vld [vmem:[%s1 + $0x20] sm:$0xff]
        %v289 = vld [vmem:[%s1 + $0x28] sm:$0xff]
        %v290 = vld [vmem:[%s1 + $0x30] sm:$0xff]
        %v291 = vld [vmem:[%s1 + $0x38] sm:$0xff]
        %293 = vset.pattern.permute.xlu0 0
        %294 = vperm.xlu0 %293, %v284
        %v295 = vpop.permute.xlu0 %294
        %298 = vset.pattern.permute.xlu0 0
        %299 = vperm.xlu0 %298, %v285
        %v300 = vpop.permute.xlu0 %299
        %303 = vset.pattern.permute.xlu0 0
        %304 = vperm.xlu0 %303, %v286
        %v305 = vpop.permute.xlu0 %304
        %308 = vset.pattern.permute.xlu0 0
        %309 = vperm.xlu0 %308, %v287
        %v310 = vpop.permute.xlu0 %309
        %313 = vset.pattern.permute.xlu0 0
        %314 = vperm.xlu0 %313, %v288
        %v315 = vpop.permute.xlu0 %314
        %318 = vset.pattern.permute.xlu0 0
        %319 = vperm.xlu0 %318, %v289
        %v320 = vpop.permute.xlu0 %319
        %323 = vset.pattern.permute.xlu0 0
        %324 = vperm.xlu0 %323, %v290
        %v325 = vpop.permute.xlu0 %324
        %328 = vset.pattern.permute.xlu0 0
        %329 = vperm.xlu0 %328, %v291
        %v330 = vpop.permute.xlu0 %329
        %v333 = vperm.slane %v283, 0
        %v334 = vperm.slane %v283, 4
        %v337 = vperm.slane %v333, 0
        %v338 = vperm.slane %v334, 0
        %v339 = vmul.f32 %v295, %v337
        %v340 = vmul.f32 %v295, %v338
        %v341 = vmul.f32 %v300, %v337
        %v342 = vmul.f32 %v300, %v338
        %v343 = vmul.f32 %v305, %v337
        %v344 = vmul.f32 %v305, %v338
        %v345 = vmul.f32 %v310, %v337
        %v346 = vmul.f32 %v310, %v338
        %v347 = vmul.f32 %v315, %v337
        %v348 = vmul.f32 %v315, %v338
        %v349 = vmul.f32 %v320, %v337
        %v350 = vmul.f32 %v320, %v338
        %v351 = vmul.f32 %v325, %v337
        %v352 = vmul.f32 %v325, %v338
        %v353 = vmul.f32 %v330, %v337
        %v354 = vmul.f32 %v330, %v338
        %355 = vset.pattern.permute.xlu0 1
        %356 = vperm.xlu0 %355, %v284
        %v357 = vpop.permute.xlu0 %356
        %359 = vset.pattern.permute.xlu0 1
        %360 = vperm.xlu0 %359, %v285
        %v361 = vpop.permute.xlu0 %360
        %363 = vset.pattern.permute.xlu0 1
        %364 = vperm.xlu0 %363, %v286
        %v365 = vpop.permute.xlu0 %364
        %367 = vset.pattern.permute.xlu0 1
        %368 = vperm.xlu0 %367, %v287
        %v369 = vpop.permute.xlu0 %368
        %371 = vset.pattern.permute.xlu0 1
        %372 = vperm.xlu0 %371, %v288
        %v373 = vpop.permute.xlu0 %372
        %375 = vset.pattern.permute.xlu0 1
        %376 = vperm.xlu0 %375, %v289
        %v377 = vpop.permute.xlu0 %376
        %379 = vset.pattern.permute.xlu0 1
        %380 = vperm.xlu0 %379, %v290
        %v381 = vpop.permute.xlu0 %380
        %383 = vset.pattern.permute.xlu0 1
        %384 = vperm.xlu0 %383, %v291
        %v385 = vpop.permute.xlu0 %384
        %v387 = vperm.slane %v283, 1
        %v388 = vperm.slane %v283, 5
        %v391 = vperm.slane %v387, 1
        %v392 = vperm.slane %v388, 1
        %v393 = vmul.f32 %v357, %v391
        %v394 = vmul.f32 %v357, %v392
        %v395 = vmul.f32 %v361, %v391
        %v396 = vmul.f32 %v361, %v392
        %v397 = vmul.f32 %v365, %v391
        %v398 = vmul.f32 %v365, %v392
        %v399 = vmul.f32 %v369, %v391
        %v400 = vmul.f32 %v369, %v392
        %v401 = vmul.f32 %v373, %v391
        %v402 = vmul.f32 %v373, %v392
        %v403 = vmul.f32 %v377, %v391
        %v404 = vmul.f32 %v377, %v392
        %v405 = vmul.f32 %v381, %v391
        %v406 = vmul.f32 %v381, %v392
        %v407 = vmul.f32 %v385, %v391
        %v408 = vmul.f32 %v385, %v392
        %v409 = vadd.f32 %v339, %v393
        %v410 = vadd.f32 %v340, %v394
        %v411 = vadd.f32 %v341, %v395
        %v412 = vadd.f32 %v342, %v396
        %v413 = vadd.f32 %v343, %v397
        %v414 = vadd.f32 %v344, %v398
        %v415 = vadd.f32 %v345, %v399
        %v416 = vadd.f32 %v346, %v400
        %v417 = vadd.f32 %v347, %v401
        %v418 = vadd.f32 %v348, %v402
        %v419 = vadd.f32 %v349, %v403
        %v420 = vadd.f32 %v350, %v404
        %v421 = vadd.f32 %v351, %v405
        %v422 = vadd.f32 %v352, %v406
        %v423 = vadd.f32 %v353, %v407
        %v424 = vadd.f32 %v354, %v408
        %425 = vset.pattern.permute.xlu0 2
        %426 = vperm.xlu0 %425, %v284
        %v427 = vpop.permute.xlu0 %426
        %429 = vset.pattern.permute.xlu0 2
        %430 = vperm.xlu0 %429, %v285
        %v431 = vpop.permute.xlu0 %430
        %433 = vset.pattern.permute.xlu0 2
        %434 = vperm.xlu0 %433, %v286
        %v435 = vpop.permute.xlu0 %434
        %437 = vset.pattern.permute.xlu0 2
        %438 = vperm.xlu0 %437, %v287
        %v439 = vpop.permute.xlu0 %438
        %441 = vset.pattern.permute.xlu0 2
        %442 = vperm.xlu0 %441, %v288
        %v443 = vpop.permute.xlu0 %442
        %445 = vset.pattern.permute.xlu0 2
        %446 = vperm.xlu0 %445, %v289
        %v447 = vpop.permute.xlu0 %446
        %449 = vset.pattern.permute.xlu0 2
        %450 = vperm.xlu0 %449, %v290
        %v451 = vpop.permute.xlu0 %450
        %453 = vset.pattern.permute.xlu0 2
        %454 = vperm.xlu0 %453, %v291
        %v455 = vpop.permute.xlu0 %454
        %v457 = vperm.slane %v283, 2
        %v458 = vperm.slane %v283, 6
        %v461 = vperm.slane %v457, 2
        %v462 = vperm.slane %v458, 2
        %v463 = vmul.f32 %v427, %v461
        %v464 = vmul.f32 %v427, %v462
        %v465 = vmul.f32 %v431, %v461
        %v466 = vmul.f32 %v431, %v462
        %v467 = vmul.f32 %v435, %v461
        %v468 = vmul.f32 %v435, %v462
        %v469 = vmul.f32 %v439, %v461
        %v470 = vmul.f32 %v439, %v462
        %v471 = vmul.f32 %v443, %v461
        %v472 = vmul.f32 %v443, %v462
        %v473 = vmul.f32 %v447, %v461
        %v474 = vmul.f32 %v447, %v462
        %v475 = vmul.f32 %v451, %v461
        %v476 = vmul.f32 %v451, %v462
        %v477 = vmul.f32 %v455, %v461
        %v478 = vmul.f32 %v455, %v462
        %v479 = vadd.f32 %v409, %v463
        %v480 = vadd.f32 %v410, %v464
        %v481 = vadd.f32 %v411, %v465
        %v482 = vadd.f32 %v412, %v466
        %v483 = vadd.f32 %v413, %v467
        %v484 = vadd.f32 %v414, %v468
        %v485 = vadd.f32 %v415, %v469
        %v486 = vadd.f32 %v416, %v470
        %v487 = vadd.f32 %v417, %v471
        %v488 = vadd.f32 %v418, %v472
        %v489 = vadd.f32 %v419, %v473
        %v490 = vadd.f32 %v420, %v474
        %v491 = vadd.f32 %v421, %v475
        %v492 = vadd.f32 %v422, %v476
        %v493 = vadd.f32 %v423, %v477
        %v494 = vadd.f32 %v424, %v478
        %v495 = vld [vmem:[%s2] sm:$0xff]
        %v496 = vld [vmem:[%s2 + $0x8] sm:$0xff]
        %v497 = vld [vmem:[%s2 + $0x10] sm:$0xff]
        %v498 = vld [vmem:[%s2 + $0x18] sm:$0xff]
        %v499 = vld [vmem:[%s2 + $0x20] sm:$0xff]
        %v500 = vld [vmem:[%s2 + $0x28] sm:$0xff]
        %v501 = vld [vmem:[%s2 + $0x30] sm:$0xff]
        %v502 = vld [vmem:[%s2 + $0x38] sm:$0xff]
        %504 = vset.pattern.permute.xlu0 0
        %505 = vperm.xlu0 %504, %v495
        %v506 = vpop.permute.xlu0 %505
        %509 = vset.pattern.permute.xlu0 0
        %510 = vperm.xlu0 %509, %v496
        %v511 = vpop.permute.xlu0 %510
        %514 = vset.pattern.permute.xlu0 0
        %515 = vperm.xlu0 %514, %v497
        %v516 = vpop.permute.xlu0 %515
        %519 = vset.pattern.permute.xlu0 0
        %520 = vperm.xlu0 %519, %v498
        %v521 = vpop.permute.xlu0 %520
        %524 = vset.pattern.permute.xlu0 0
        %525 = vperm.xlu0 %524, %v499
        %v526 = vpop.permute.xlu0 %525
        %529 = vset.pattern.permute.xlu0 0
        %530 = vperm.xlu0 %529, %v500
        %v531 = vpop.permute.xlu0 %530
        %534 = vset.pattern.permute.xlu0 0
        %535 = vperm.xlu0 %534, %v501
        %v536 = vpop.permute.xlu0 %535
        %539 = vset.pattern.permute.xlu0 0
        %540 = vperm.xlu0 %539, %v502
        %v541 = vpop.permute.xlu0 %540
        %v543 = vadd.f32 %v479, %v506
        %v544 = vadd.f32 %v480, %v506
        %v545 = vadd.f32 %v481, %v511
        %v546 = vadd.f32 %v482, %v511
        %v547 = vadd.f32 %v483, %v516
        %v548 = vadd.f32 %v484, %v516
        %v549 = vadd.f32 %v485, %v521
        %v550 = vadd.f32 %v486, %v521
        %v551 = vadd.f32 %v487, %v526
        %v552 = vadd.f32 %v488, %v526
        %v553 = vadd.f32 %v489, %v531
        %v554 = vadd.f32 %v490, %v531
        %v555 = vadd.f32 %v491, %v536
        %v556 = vadd.f32 %v492, %v536
        %v557 = vadd.f32 %v493, %v541
        %v558 = vadd.f32 %v494, %v541
        %v559 = vmax.f32 %v543, 0.0
        %v560 = vmax.f32 %v544, 0.0
        %v561 = vmax.f32 %v545, 0.0
        %v562 = vmax.f32 %v546, 0.0
        %v563 = vmax.f32 %v547, 0.0
        %v564 = vmax.f32 %v548, 0.0
        %v565 = vmax.f32 %v549, 0.0
        %v566 = vmax.f32 %v550, 0.0
        %v567 = vmax.f32 %v551, 0.0
        %v568 = vmax.f32 %v552, 0.0
        %v569 = vmax.f32 %v553, 0.0
        %v570 = vmax.f32 %v554, 0.0
        %v571 = vmax.f32 %v555, 0.0
        %v572 = vmax.f32 %v556, 0.0
        %v573 = vmax.f32 %v557, 0.0
        %v574 = vmax.f32 %v558, 0.0
        %v575 = vpack.c.bf16 %v561, %v559
        %v576 = vpack.c.bf16 %v562, %v560
        %v577 = vpack.c.bf16 %v565, %v563
        %v578 = vpack.c.bf16 %v566, %v564
        %v579 = vpack.c.bf16 %v569, %v567
        %v580 = vpack.c.bf16 %v570, %v568
        %v581 = vpack.c.bf16 %v573, %v571
        %v582 = vpack.c.bf16 %v574, %v572
        %v583 = vld [vmem:[%s3] sm:$0xf]
        %v584 = vld [vmem:[%s3 + $0x4] sm:$0xf]
        %v585 = vld [vmem:[%s3 + $0x8] sm:$0xf]
        %v586 = vld [vmem:[%s3 + $0xc] sm:$0xf]
        %v587 = vld [vmem:[%s3 + $0x10] sm:$0xf]
        %v588 = vld [vmem:[%s3 + $0x14] sm:$0xf]
        %v589 = vld [vmem:[%s3 + $0x18] sm:$0xf]
        %v590 = vld [vmem:[%s3 + $0x1c] sm:$0xf]
        %v591 = vld [vmem:[%s4] sm:$0xff]
        %v592 = vld [vmem:[%s4 + $0x8] sm:$0xff]
        %v593 = vld [vmem:[%s4 + $0x10] sm:$0xff]
        %v594 = vld [vmem:[%s4 + $0x18] sm:$0xff]
        %v595 = vld [vmem:[%s4 + $0x20] sm:$0xff]
        %v596 = vld [vmem:[%s4 + $0x28] sm:$0xff]
        %v597 = vld [vmem:[%s4 + $0x30] sm:$0xff]
        %v598 = vld [vmem:[%s4 + $0x38] sm:$0xff]
        %600 = vset.pattern.permute.xlu0 0
        %601 = vperm.xlu0 %600, %v591
        %v602 = vpop.permute.xlu0 %601
        %605 = vset.pattern.permute.xlu0 0
        %606 = vperm.xlu0 %605, %v592
        %v607 = vpop.permute.xlu0 %606
        %610 = vset.pattern.permute.xlu0 0
        %611 = vperm.xlu0 %610, %v593
        %v612 = vpop.permute.xlu0 %611
        %615 = vset.pattern.permute.xlu0 0
        %616 = vperm.xlu0 %615, %v594
        %v617 = vpop.permute.xlu0 %616
        %620 = vset.pattern.permute.xlu0 0
        %621 = vperm.xlu0 %620, %v595
        %v622 = vpop.permute.xlu0 %621
        %625 = vset.pattern.permute.xlu0 0
        %626 = vperm.xlu0 %625, %v596
        %v627 = vpop.permute.xlu0 %626
        %630 = vset.pattern.permute.xlu0 0
        %631 = vperm.xlu0 %630, %v597
        %v632 = vpop.permute.xlu0 %631
        %635 = vset.pattern.permute.xlu0 0
        %636 = vperm.xlu0 %635, %v598
        %v637 = vpop.permute.xlu0 %636
        %v647 = vunpack.c.l.b16 %v583
        %v648 = vunpack.c.l.b16 %v584
        %v649 = vunpack.c.l.b16 %v585
        %v650 = vunpack.c.l.b16 %v586
        %v651 = vunpack.c.l.b16 %v587
        %v652 = vunpack.c.l.b16 %v588
        %v653 = vunpack.c.l.b16 %v589
        %v654 = vunpack.c.l.b16 %v590
        %v655 = vpack.c.b16 %v648, %v647
        %v656 = vpack.c.b16 %v650, %v649
        %v657 = vpack.c.b16 %v652, %v651
        %v658 = vpack.c.b16 %v654, %v653
        %vm659 = vcmask 523264
        %v661 = vsel %vm659, %v655, 0
        %v664 = vsel %vm659, %v656, 0
        %v667 = vsel %vm659, %v657, 0
        %v670 = vsel %vm659, %v658, 0
        %672 = vmatpush.bf16.msra.mxu0 0
        %673 = vmatpush.bf16.msra.mxu0 0
        %674 = vmatpush.bf16.msra.mxu0 0
        %675 = vmatpush.bf16.msra.mxu0 0
        %676 = vmatpush.bf16.msra.mxu0 %v581
        %677 = vmatpush.bf16.msra.mxu0 %v579
        %678 = vmatpush.bf16.msra.mxu0 %v577
        %679 = vmatpush.bf16.msra.mxu0 %v575
        %680 = vmatmul.bf16.gmra.mxu0 %v661
        %v681 = vpop.f32.mrf.mxu0
        %v682 = vadd.f32 %v602, %v681
        %v683 = vpop.f32.mrf.mxu0
        %v684 = vadd.f32 %v607, %v683
        %685 = vmatmul.bf16.gmra.mxu0 %v664
        %v686 = vpop.f32.mrf.mxu0
        %v687 = vadd.f32 %v612, %v686
        %v688 = vpop.f32.mrf.mxu0
        %v689 = vadd.f32 %v617, %v688
        %690 = vmatmul.bf16.gmra.mxu0 %v667
        %v691 = vpop.f32.mrf.mxu0
        %v692 = vadd.f32 %v622, %v691
        %v693 = vpop.f32.mrf.mxu0
        %v694 = vadd.f32 %v627, %v693
        %695 = vmatmul.bf16.gmra.mxu0 %v670
        %v696 = vpop.f32.mrf.mxu0
        %v697 = vadd.f32 %v632, %v696
        %v698 = vpop.f32.mrf.mxu0
        %v699 = vadd.f32 %v637, %v698
        %700 = vdwg.mxu0
        %701 = vmatpush.bf16.msra.mxu0 0
        %702 = vmatpush.bf16.msra.mxu0 0
        %703 = vmatpush.bf16.msra.mxu0 0
        %704 = vmatpush.bf16.msra.mxu0 0
        %705 = vmatpush.bf16.msra.mxu0 %v582
        %706 = vmatpush.bf16.msra.mxu0 %v580
        %707 = vmatpush.bf16.msra.mxu0 %v578
        %708 = vmatpush.bf16.msra.mxu0 %v576
        %709 = vmatmul.bf16.gmra.mxu0 %v661
        %v710 = vpop.f32.mrf.mxu0
        %v711 = vadd.f32 %v602, %v710
        %v712 = vpop.f32.mrf.mxu0
        %v713 = vadd.f32 %v607, %v712
        %714 = vmatmul.bf16.gmra.mxu0 %v664
        %v715 = vpop.f32.mrf.mxu0
        %v716 = vadd.f32 %v612, %v715
        %v717 = vpop.f32.mrf.mxu0
        %v718 = vadd.f32 %v617, %v717
        %719 = vmatmul.bf16.gmra.mxu0 %v667
        %v720 = vpop.f32.mrf.mxu0
        %v721 = vadd.f32 %v622, %v720
        %v722 = vpop.f32.mrf.mxu0
        %v723 = vadd.f32 %v627, %v722
        %724 = vmatmul.bf16.gmra.mxu0 %v670
        %v725 = vpop.f32.mrf.mxu0
        %v726 = vadd.f32 %v632, %v725
        %v727 = vpop.f32.mrf.mxu0
        %v728 = vadd.f32 %v637, %v727
        %729 = vdwg.mxu0
        %v730 = vmax.f32 %v682, 0.0
        %v731 = vmax.f32 %v711, 0.0
        %v732 = vmax.f32 %v684, 0.0
        %v733 = vmax.f32 %v713, 0.0
        %v734 = vmax.f32 %v687, 0.0
        %v735 = vmax.f32 %v716, 0.0
        %v736 = vmax.f32 %v689, 0.0
        %v737 = vmax.f32 %v718, 0.0
        %v738 = vmax.f32 %v692, 0.0
        %v739 = vmax.f32 %v721, 0.0
        %v740 = vmax.f32 %v694, 0.0
        %v741 = vmax.f32 %v723, 0.0
        %v742 = vmax.f32 %v697, 0.0
        %v743 = vmax.f32 %v726, 0.0
        %v744 = vmax.f32 %v699, 0.0
        %v745 = vmax.f32 %v728, 0.0
        %v746 = vpack.c.bf16 %v732, %v730
        %v747 = vpack.c.bf16 %v733, %v731
        %v748 = vpack.c.bf16 %v736, %v734
        %v749 = vpack.c.bf16 %v737, %v735
        %v750 = vpack.c.bf16 %v740, %v738
        %v751 = vpack.c.bf16 %v741, %v739
        %v752 = vpack.c.bf16 %v744, %v742
        %v753 = vpack.c.bf16 %v745, %v743
        %v754 = vld [vmem:[%s5] sm:$0x1]
        %v755 = vld [vmem:[#allocation2] sm:$0x1]
        %757 = vset.pattern.permute.xlu0 0
        %758 = vperm.xlu0 %757, %v755
        %v759 = vpop.permute.xlu0 %758
        %v761 = vperm.slane %v759, 0
        %v763 = vsel %vm659, %v754, 0
        %765 = vmatpush.bf16.msra.mxu0 0
        %766 = vmatpush.bf16.msra.mxu0 0
        %767 = vmatpush.bf16.msra.mxu0 0
        %768 = vmatpush.bf16.msra.mxu0 0
        %769 = vmatpush.bf16.msra.mxu0 %v752
        %770 = vmatpush.bf16.msra.mxu0 %v750
        %771 = vmatpush.bf16.msra.mxu0 %v748
        %772 = vmatpush.bf16.msra.mxu0 %v746
        %773 = vmatmul.bf16.gmra.mxu0 %v763
        %v774 = vpop.f32.mrf.mxu0
        %v775 = vadd.f32 %v761, %v774
        %v776 = vpop.f32.mrf.mxu0
        %777 = vdwg.mxu0
        %778 = vmatpush.bf16.msra.mxu0 0
        %779 = vmatpush.bf16.msra.mxu0 0
        %780 = vmatpush.bf16.msra.mxu0 0
        %781 = vmatpush.bf16.msra.mxu0 0
        %782 = vmatpush.bf16.msra.mxu0 %v753
        %783 = vmatpush.bf16.msra.mxu0 %v751
        %784 = vmatpush.bf16.msra.mxu0 %v749
        %785 = vmatpush.bf16.msra.mxu0 %v747
        %786 = vmatmul.bf16.gmra.mxu0 %v763
        %v787 = vpop.f32.mrf.mxu0
        %v788 = vadd.f32 %v761, %v787
        %v789 = vpop.f32.mrf.mxu0
        %790 = vdwg.mxu0
        %v793 = vrot.slane %v788, 7
        %vm794 = vcmask 1040384
        %v795 = vsel %vm794, %v775, %v793
        %v797 = vlaneseq
        %vm798 = vcmp.ge.s32.totalorder %v797, 0
        %vm799 = vcmp.lt.s32.totalorder %v797, 256
        %vm800 = vmand %vm798, %vm799
        %801 = vst.msk [vmem:[%s274] sm:$0x3] %vm800, %v795
        %s802 = sand.u32 %s183, 1
        %s803 = scalar_lea.sflag [#allocation4], %s802
        %s804 = sand.u32 %s183, 1
        %s805 = smul.addr %s804, 2
        %s806 = scalar_lea.vmem [#allocation3], %s805
        // Predicated region
        $region49: #{tpu_custom_call.1} parent=47 // pred_check
          %p807 = pneg %p193
        $region50: #{tpu_custom_call.1} parent=47 // pred_check_branch
          %809 = sbr.rel (%p807) target = $region52
        $region51: #{tpu_custom_call.1} parent=47 // pred_region
          %s810 = smul.u32 2, %s23
          %812 = vsyncadd %s803, 0
          %s813 = scalar_lea.hbm %s7, %s810
          %s815 = sshll.u32 %s806, 4
          %s816 = int_to_ptr.vmem [resolvable:$true] %s815
          %s817 = sshll.u32 %s813, 4
          %s818 = int_to_ptr.hbm [resolvable:$true] %s817
          %820 = dma.vmem_to_hbm [thread:$0]  %s816, 32, %s818, %s803
        $region52: #{tpu_custom_call.1} parent=47 // pred_fallthru
          _
      $region48: #{tpu_custom_call.1} parent=5 // pred_fallthru
        _
      %p821 = scmp.le.s32.totalorder 2, %s18
      // Predicated region
      $region53: #{tpu_custom_call.1} parent=5 // pred_check
        %p822 = pneg %p821
      $region54: #{tpu_custom_call.1} parent=5 // pred_check_branch
        %824 = sbr.rel (%p822) target = $region56
      $region55: #{tpu_custom_call.1} parent=5 // pred_region
        %s825 = ssub.s32 %s18, 2
        // Predicated region
        $region57: #{tpu_custom_call.1} parent=55 // pred_check
          %p826 = pneg %p199
        $region58: #{tpu_custom_call.1} parent=55 // pred_check_branch
          %828 = sbr.rel (%p826) target = $region60
        $region59: #{tpu_custom_call.1} parent=55 // pred_region
          %s829 = sand.u32 %s184, 1
          %s830 = scalar_lea.sflag [#allocation4], %s829
          %s831 = sand.u32 %s184, 1
          %s832 = smul.addr %s831, 2
          %s833 = scalar_lea.vmem [#allocation3], %s832
          %835 = dma.done %s830, 32
        $region60: #{tpu_custom_call.1} parent=55 // pred_fallthru
          _
      $region56: #{tpu_custom_call.1} parent=5 // pred_fallthru
        _
    $region6: #{tpu_custom_call.1} parent=1 // loop_footer
      %s22 = sadd.s32 1, %s18
    $region7: #{tpu_custom_call.1} parent=1 // loop_footer_branch
      %17 = sbr.rel target = $region3
    $region8: #{tpu_custom_call.1} parent=1 // loop_exit
      _
    %836 = vsyncpa [#allocation4], 1
    %s837 = scalar_lea.sflag [#allocation4], 1
    %838 = vsyncpa %s837, 1

</llo_original>
